<compile_context>
chip_gen: v7x
topology: tpu7x:2x2x1
jax: 0.10.0
libtpu: 0.0.40
codegen_flags: <defaults>
</compile_context>

<pallas_src>
import functools

import jax
import jax.numpy as jnp
from jax.experimental import pallas as pl

# Model hyperparameters (small shapes consistent with the module)
INPUT_DIM = 27
HD = 32            # hidden dim (module uses 300; kept small per instructions)
NL = 1
NUM_CLASSES = 2
BATCH = 2
SEQ = 8

B_PAD = 8          # batch padded to one sublane tile
LANES = 128        # lane width: padded input-feature dim, 4*H gate width, FC output pad


def _lstm_classifier_kernel(x_ref, wih_ref, whh_ref, b_ref, wfc_ref, bfc_ref,
                            out_ref, *, seq_len, hidden):
    """Hoisted input projection + fully-unrolled LSTM recurrence + FC, one invocation."""
    T, H = seq_len, hidden
    BP = B_PAD

    # Hoisted input projection: one bf16 MXU call covers every timestep, bias folded in.
    # x_ref is (T*8, 128) bf16 with row index t*8 + b.
    gx = (jnp.dot(x_ref[...], wih_ref[...], preferred_element_type=jnp.float32)
          + b_ref[...])                                          # (T*8, 4H) f32

    w_hh = whh_ref[...]                                          # (H, 4H) bf16, loaded once

    # Hoisted lane constants (JAX does not CSE broadcasts): cell-gate lanes [2H,3H) get
    # tanh(g) = 2*sigmoid(2g) - 1 (the 2x pre-activation scale is folded into the weights
    # by the wrapper); all other lanes keep plain sigmoid.
    lane = jax.lax.broadcasted_iota(jnp.int32, (BP, 4 * H), 1)
    is_cell = (lane >= 2 * H) & (lane < 3 * H)
    scale = jnp.where(is_cell, 2.0, 1.0).astype(jnp.float32)
    shift = jnp.where(is_cell, -1.0, 0.0).astype(jnp.float32)

    h = jnp.zeros((BP, H), jnp.float32)
    c = jnp.zeros((BP, H), jnp.float32)

    # Fully-unrolled time recurrence; h/c stay in vregs (no per-step VMEM round-trip).
    # Each step: one (8,128)-aligned static slice, one bf16 MXU dot, one sigmoid over the
    # full gate vreg, and a handful of VALU ops.
    # TODO(synk): hold W_hh resident in the MXU weight registers across the unrolled loop
    # via pltpu.matmul_push_rhs / matmul_acc_lhs / matmul_pop once that path is validated.
    for t in range(T):
        gates = gx[t * BP:(t + 1) * BP, :] + jnp.dot(
            h.astype(jnp.bfloat16), w_hh, preferred_element_type=jnp.float32)  # (8, 4H)
        act = jax.nn.sigmoid(gates) * scale + shift               # single EUP pass + FMA
        i_g = act[:, 0 * H:1 * H]
        f_g = act[:, 1 * H:2 * H]
        g_g = act[:, 2 * H:3 * H]
        o_g = act[:, 3 * H:4 * H]
        c = f_g * c + i_g * g_g
        h = o_g * jnp.tanh(c)

    # Lane-dense FC (W_fc padded to 128 output lanes in the wrapper) -> (8, 128) probs.
    logits = (jnp.dot(h, wfc_ref[...], preferred_element_type=jnp.float32)
              + bfc_ref[...])
    probs = jax.nn.sigmoid(logits)

    # Single packed lane-dense output slab: rows 0-7 = [h | c | zeros], rows 8-15 = probs.
    hc = jnp.concatenate([h, c, jnp.zeros((BP, LANES - 2 * H), jnp.float32)], axis=1)
    out_ref[...] = jnp.concatenate([hc, probs], axis=0)           # one (16,128) store


@jax.jit
def classifier_lstm_forward(inputs, X_lengths, hidden, params):
    """Mirrors Classifier_LSTM.forward(inputs, X_lengths, hidden).

    inputs: (B, T, INPUT_DIM) float32 (batch_first, like the PyTorch module)
    X_lengths, hidden: unused by the reference forward (kept for signature parity).
    Returns (out, (h_n, c_n)) with out: (B, NUM_CLASSES), h_n/c_n: (NL, B, HD).
    """
    del X_lengths, hidden
    B, T, D = inputs.shape
    H = params["w_hh"].shape[0]
    NC = params["w_fc"].shape[1]

    # --- trace-time weight prep (plain XLA, outside the kernel) ---
    # 2x pre-scale of the cell-gate (g) pre-activation columns -> kernel needs one sigmoid.
    col = jnp.arange(4 * H)
    cell_scale = jnp.where((col >= 2 * H) & (col < 3 * H), 2.0, 1.0).astype(jnp.float32)
    w_ih = jnp.pad(params["w_ih"], ((0, LANES - D), (0, 0))) * cell_scale     # (128, 4H)
    w_hh = params["w_hh"] * cell_scale                                        # (H, 4H)
    bias = params["bias"] * cell_scale                                        # (1, 4H)
    # Lane-dense FC: pad the class dim to a full 128-lane tile (zero cols are neutral).
    w_fc = jnp.pad(params["w_fc"], ((0, 0), (0, LANES - NC)))                 # (H, 128)
    b_fc = jnp.pad(params["b_fc"], ((0, 0), (0, LANES - NC)))                 # (1, 128)

    # Input glue (one fused XLA copy): time-major + pad batch->8 sublanes and
    # features->128 lanes + flatten -> (T*8, 128), row index t*8 + b.
    x_tm = jnp.transpose(inputs.astype(jnp.float32), (1, 0, 2))               # (T, B, D)
    x_tm = jnp.pad(x_tm, ((0, 0), (0, B_PAD - B), (0, LANES - D)))            # (T, 8, 128)
    x2d = x_tm.reshape(T * B_PAD, LANES)

    kernel = functools.partial(_lstm_classifier_kernel, seq_len=T, hidden=H)

    slab = pl.pallas_call(
        kernel,
        out_shape=jax.ShapeDtypeStruct((2 * B_PAD, LANES), jnp.float32),
        # Grid-less: everything is VMEM-resident for a single invocation (no per-step
        # pipeline overhead; total footprint < 100 KiB, far under any VMEM limit).
        # TODO(synk): when processing many sequences, add a "parallel" grid axis over
        # batch tiles of >=8 sequences (weights stay resident, per-call cost amortized;
        # also lets v7x megacore shard full tiles across its two TensorCores).
    )(x2d.astype(jnp.bfloat16),
      w_ih.astype(jnp.bfloat16),
      w_hh.astype(jnp.bfloat16),
      bias, w_fc, b_fc)

    h_n = slab[:B, 0:H]
    c_n = slab[:B, H:2 * H]
    out = slab[B_PAD:B_PAD + B, :NC]
    hidden1 = (h_n.reshape(NL, B, H), c_n.reshape(NL, B, H))
    return out, hidden1


def init_params(key, input_dim=INPUT_DIM, hidden=HD, num_classes=NUM_CLASSES):
    """Deterministic init (PyTorch-style uniform(-1/sqrt(H), 1/sqrt(H)))."""
    k1, k2, k3, k4, k5, k6 = jax.random.split(key, 6)
    bound = 1.0 / jnp.sqrt(hidden)
    u = lambda k, shape: jax.random.uniform(k, shape, jnp.float32, -bound, bound)
    w_ih = u(k1, (input_dim, 4 * hidden))     # transposed vs. PyTorch's (4H, D)
    w_hh = u(k2, (hidden, 4 * hidden))        # transposed vs. PyTorch's (4H, H)
    b_ih = u(k3, (4 * hidden,))
    b_hh = u(k4, (4 * hidden,))
    w_fc = jax.random.uniform(k5, (hidden, num_classes), jnp.float32, -bound, bound)
    b_fc = jax.random.uniform(k6, (num_classes,), jnp.float32, -bound, bound)
    return {
        "w_ih": w_ih,
        "w_hh": w_hh,
        "bias": (b_ih + b_hh).reshape(1, 4 * hidden),
        "w_fc": w_fc,
        "b_fc": b_fc.reshape(1, num_classes),
    }


def _reference_forward(inputs, params):
    """Pure-JAX f32 reference (lax.scan LSTM) for correctness check."""
    B = inputs.shape[0]
    H = params["w_hh"].shape[0]
    x_tm = jnp.transpose(inputs, (1, 0, 2))

    def step(carry, x_t):
        h, c = carry
        gates = x_t @ params["w_ih"] + h @ params["w_hh"] + params["bias"]
        i = jax.nn.sigmoid(gates[:, 0 * H:1 * H])
        f = jax.nn.sigmoid(gates[:, 1 * H:2 * H])
        g = jnp.tanh(gates[:, 2 * H:3 * H])
        o = jax.nn.sigmoid(gates[:, 3 * H:4 * H])
        c = f * c + i * g
        h = o * jnp.tanh(c)
        return (h, c), None

    (h, c), _ = jax.lax.scan(step, (jnp.zeros((B, H)), jnp.zeros((B, H))), x_tm)
    out = jax.nn.sigmoid(h @ params["w_fc"] + params["b_fc"])
    return out, (h, c)


if __name__ == "__main__":
    key = jax.random.PRNGKey(0)
    k_x, k_p = jax.random.split(key)

    x = jax.random.normal(k_x, (BATCH, SEQ, INPUT_DIM), jnp.float32)
    X_lengths = jnp.full((BATCH,), SEQ, jnp.int32)   # unused by forward (parity only)
    hidden0 = (jnp.zeros((NL, BATCH, HD), jnp.float32),
               jnp.zeros((NL, BATCH, HD), jnp.float32))
    params = init_params(k_p)

    out, (h_n, c_n) = classifier_lstm_forward(x, X_lengths, hidden0, params)
    jax.block_until_ready(out)
    jax.block_until_ready(h_n)
    jax.block_until_ready(c_n)

    ref_out, (ref_h, ref_c) = _reference_forward(x, params)
    # bf16 MXU operands (f32 accumulate) -> tolerance relaxed vs. the pure-f32 reference.
    assert jnp.allclose(out, ref_out, atol=1e-2), "output mismatch vs. JAX reference"
    assert jnp.allclose(h_n[0], ref_h, atol=1e-2), "h_n mismatch vs. JAX reference"
    assert jnp.allclose(c_n[0], ref_c, atol=1e-2), "c_n mismatch vs. JAX reference"

    print("KERNEL_OK")
</pallas_src>

<mosaic_0001>
module attributes {stable_mosaic.version = 11 : i64} {
  func.func @_lstm_classifier_kernel(%arg0: memref<64x128xbf16, #tpu.memory_space<vmem>>, %arg1: memref<128x128xbf16, #tpu.memory_space<vmem>>, %arg2: memref<32x128xbf16, #tpu.memory_space<vmem>>, %arg3: memref<1x128xf32, #tpu.memory_space<vmem>>, %arg4: memref<32x128xf32, #tpu.memory_space<vmem>>, %arg5: memref<1x128xf32, #tpu.memory_space<vmem>>, %arg6: memref<16x128xf32, #tpu.memory_space<vmem>>) attributes {dimension_semantics = [], scalar_prefetch = 0 : i64, scratch_operands = 0 : i64, tpu.core_type = #tpu.core_type<tc>} {
    %c0 = arith.constant 0 : index
    %c0_0 = arith.constant 0 : index
    %0 = vector.load %arg0[%c0, %c0_0] : memref<64x128xbf16, #tpu.memory_space<vmem>>, vector<64x128xbf16>
    %c0_1 = arith.constant 0 : index
    %c0_2 = arith.constant 0 : index
    %1 = vector.load %arg1[%c0_1, %c0_2] : memref<128x128xbf16, #tpu.memory_space<vmem>>, vector<128x128xbf16>
    %cst = arith.constant dense<0.000000e+00> : vector<64x128xf32>
    %2 = tpu.matmul %0, %1, %cst {dimension_numbers = #tpu.dot_dimension_numbers<[1], [0], [0], [1], [0, 0, 1, 1], [], []>} : vector<64x128xbf16>, vector<128x128xbf16>, vector<64x128xf32> -> vector<64x128xf32>
    %c0_3 = arith.constant 0 : index
    %c0_4 = arith.constant 0 : index
    %3 = vector.load %arg3[%c0_3, %c0_4] : memref<1x128xf32, #tpu.memory_space<vmem>>, vector<1x128xf32>
    %4 = vector.broadcast %3 : vector<1x128xf32> to vector<64x128xf32>
    %5 = arith.addf %2, %4 : vector<64x128xf32>
    %c0_5 = arith.constant 0 : index
    %c0_6 = arith.constant 0 : index
    %6 = vector.load %arg2[%c0_5, %c0_6] : memref<32x128xbf16, #tpu.memory_space<vmem>>, vector<32x128xbf16>
    %7 = tpu.iota {dimensions = array<i32: 1>} : vector<8x128xi32>
    %c64_i32 = arith.constant 64 : i32
    %8 = vector.broadcast %c64_i32 : i32 to vector<8x128xi32>
    %9 = arith.cmpi sge, %7, %8 : vector<8x128xi32>
    %c96_i32 = arith.constant 96 : i32
    %10 = vector.broadcast %c96_i32 : i32 to vector<8x128xi32>
    %11 = arith.cmpi slt, %7, %10 : vector<8x128xi32>
    %12 = arith.andi %9, %11 : vector<8x128xi1>
    %cst_7 = arith.constant 2.000000e+00 : f32
    %cst_8 = arith.constant 1.000000e+00 : f32
    %13 = vector.broadcast %cst_7 : f32 to vector<8x128xf32>
    %14 = vector.broadcast %cst_8 : f32 to vector<8x128xf32>
    %15 = arith.select %12, %13, %14 : vector<8x128xi1>, vector<8x128xf32>
    %cst_9 = arith.constant -1.000000e+00 : f32
    %cst_10 = arith.constant 0.000000e+00 : f32
    %16 = vector.broadcast %cst_9 : f32 to vector<8x128xf32>
    %17 = vector.broadcast %cst_10 : f32 to vector<8x128xf32>
    %18 = arith.select %12, %16, %17 : vector<8x128xi1>, vector<8x128xf32>
    %cst_11 = arith.constant 0.000000e+00 : f32
    %19 = vector.broadcast %cst_11 : f32 to vector<8x32xf32>
    %cst_12 = arith.constant 0.000000e+00 : f32
    %20 = vector.broadcast %cst_12 : f32 to vector<8x32xf32>
    %21 = vector.extract_strided_slice %5 {offsets = [0, 0], sizes = [8, 128], strides = [1, 1]} : vector<64x128xf32> to vector<8x128xf32>
    %22 = arith.truncf %19 : vector<8x32xf32> to vector<8x32xbf16>
    %cst_13 = arith.constant dense<0.000000e+00> : vector<8x128xf32>
    %23 = tpu.matmul %22, %6, %cst_13 {dimension_numbers = #tpu.dot_dimension_numbers<[1], [0], [0], [1], [0, 0, 1, 1], [], []>} : vector<8x32xbf16>, vector<32x128xbf16>, vector<8x128xf32> -> vector<8x128xf32>
    %24 = arith.addf %21, %23 : vector<8x128xf32>
    %25 = arith.negf %24 : vector<8x128xf32>
    %26 = math.exp %25 : vector<8x128xf32>
    %cst_14 = arith.constant 1.000000e+00 : f32
    %27 = vector.broadcast %cst_14 : f32 to vector<8x128xf32>
    %28 = arith.addf %27, %26 : vector<8x128xf32>
    %29 = arith.divf %27, %28 : vector<8x128xf32>
    %30 = arith.mulf %29, %15 : vector<8x128xf32>
    %31 = arith.addf %30, %18 : vector<8x128xf32>
    %32 = vector.extract_strided_slice %31 {offsets = [0, 0], sizes = [8, 32], strides = [1, 1]} : vector<8x128xf32> to vector<8x32xf32>
    %33 = vector.extract_strided_slice %31 {offsets = [0, 32], sizes = [8, 32], strides = [1, 1]} : vector<8x128xf32> to vector<8x32xf32>
    %34 = vector.extract_strided_slice %31 {offsets = [0, 64], sizes = [8, 32], strides = [1, 1]} : vector<8x128xf32> to vector<8x32xf32>
    %35 = vector.extract_strided_slice %31 {offsets = [0, 96], sizes = [8, 32], strides = [1, 1]} : vector<8x128xf32> to vector<8x32xf32>
    %36 = arith.mulf %33, %20 : vector<8x32xf32>
    %37 = arith.mulf %32, %34 : vector<8x32xf32>
    %38 = arith.addf %36, %37 : vector<8x32xf32>
    %39 = math.tanh %38 : vector<8x32xf32>
    %40 = arith.mulf %35, %39 : vector<8x32xf32>
    %41 = vector.extract_strided_slice %5 {offsets = [8, 0], sizes = [8, 128], strides = [1, 1]} : vector<64x128xf32> to vector<8x128xf32>
    %42 = arith.truncf %40 : vector<8x32xf32> to vector<8x32xbf16>
    %cst_15 = arith.constant dense<0.000000e+00> : vector<8x128xf32>
    %43 = tpu.matmul %42, %6, %cst_15 {dimension_numbers = #tpu.dot_dimension_numbers<[1], [0], [0], [1], [0, 0, 1, 1], [], []>} : vector<8x32xbf16>, vector<32x128xbf16>, vector<8x128xf32> -> vector<8x128xf32>
    %44 = arith.addf %41, %43 : vector<8x128xf32>
    %45 = arith.negf %44 : vector<8x128xf32>
    %46 = math.exp %45 : vector<8x128xf32>
    %cst_16 = arith.constant 1.000000e+00 : f32
    %47 = vector.broadcast %cst_16 : f32 to vector<8x128xf32>
    %48 = arith.addf %47, %46 : vector<8x128xf32>
    %49 = arith.divf %47, %48 : vector<8x128xf32>
    %50 = arith.mulf %49, %15 : vector<8x128xf32>
    %51 = arith.addf %50, %18 : vector<8x128xf32>
    %52 = vector.extract_strided_slice %51 {offsets = [0, 0], sizes = [8, 32], strides = [1, 1]} : vector<8x128xf32> to vector<8x32xf32>
    %53 = vector.extract_strided_slice %51 {offsets = [0, 32], sizes = [8, 32], strides = [1, 1]} : vector<8x128xf32> to vector<8x32xf32>
    %54 = vector.extract_strided_slice %51 {offsets = [0, 64], sizes = [8, 32], strides = [1, 1]} : vector<8x128xf32> to vector<8x32xf32>
    %55 = vector.extract_strided_slice %51 {offsets = [0, 96], sizes = [8, 32], strides = [1, 1]} : vector<8x128xf32> to vector<8x32xf32>
    %56 = arith.mulf %53, %38 : vector<8x32xf32>
    %57 = arith.mulf %52, %54 : vector<8x32xf32>
    %58 = arith.addf %56, %57 : vector<8x32xf32>
    %59 = math.tanh %58 : vector<8x32xf32>
    %60 = arith.mulf %55, %59 : vector<8x32xf32>
    %61 = vector.extract_strided_slice %5 {offsets = [16, 0], sizes = [8, 128], strides = [1, 1]} : vector<64x128xf32> to vector<8x128xf32>
    %62 = arith.truncf %60 : vector<8x32xf32> to vector<8x32xbf16>
    %cst_17 = arith.constant dense<0.000000e+00> : vector<8x128xf32>
    %63 = tpu.matmul %62, %6, %cst_17 {dimension_numbers = #tpu.dot_dimension_numbers<[1], [0], [0], [1], [0, 0, 1, 1], [], []>} : vector<8x32xbf16>, vector<32x128xbf16>, vector<8x128xf32> -> vector<8x128xf32>
    %64 = arith.addf %61, %63 : vector<8x128xf32>
    %65 = arith.negf %64 : vector<8x128xf32>
    %66 = math.exp %65 : vector<8x128xf32>
    %cst_18 = arith.constant 1.000000e+00 : f32
    %67 = vector.broadcast %cst_18 : f32 to vector<8x128xf32>
    %68 = arith.addf %67, %66 : vector<8x128xf32>
    %69 = arith.divf %67, %68 : vector<8x128xf32>
    %70 = arith.mulf %69, %15 : vector<8x128xf32>
    %71 = arith.addf %70, %18 : vector<8x128xf32>
    %72 = vector.extract_strided_slice %71 {offsets = [0, 0], sizes = [8, 32], strides = [1, 1]} : vector<8x128xf32> to vector<8x32xf32>
    %73 = vector.extract_strided_slice %71 {offsets = [0, 32], sizes = [8, 32], strides = [1, 1]} : vector<8x128xf32> to vector<8x32xf32>
    %74 = vector.extract_strided_slice %71 {offsets = [0, 64], sizes = [8, 32], strides = [1, 1]} : vector<8x128xf32> to vector<8x32xf32>
    %75 = vector.extract_strided_slice %71 {offsets = [0, 96], sizes = [8, 32], strides = [1, 1]} : vector<8x128xf32> to vector<8x32xf32>
    %76 = arith.mulf %73, %58 : vector<8x32xf32>
    %77 = arith.mulf %72, %74 : vector<8x32xf32>
    %78 = arith.addf %76, %77 : vector<8x32xf32>
    %79 = math.tanh %78 : vector<8x32xf32>
    %80 = arith.mulf %75, %79 : vector<8x32xf32>
    %81 = vector.extract_strided_slice %5 {offsets = [24, 0], sizes = [8, 128], strides = [1, 1]} : vector<64x128xf32> to vector<8x128xf32>
    %82 = arith.truncf %80 : vector<8x32xf32> to vector<8x32xbf16>
    %cst_19 = arith.constant dense<0.000000e+00> : vector<8x128xf32>
    %83 = tpu.matmul %82, %6, %cst_19 {dimension_numbers = #tpu.dot_dimension_numbers<[1], [0], [0], [1], [0, 0, 1, 1], [], []>} : vector<8x32xbf16>, vector<32x128xbf16>, vector<8x128xf32> -> vector<8x128xf32>
    %84 = arith.addf %81, %83 : vector<8x128xf32>
    %85 = arith.negf %84 : vector<8x128xf32>
    %86 = math.exp %85 : vector<8x128xf32>
    %cst_20 = arith.constant 1.000000e+00 : f32
    %87 = vector.broadcast %cst_20 : f32 to vector<8x128xf32>
    %88 = arith.addf %87, %86 : vector<8x128xf32>
    %89 = arith.divf %87, %88 : vector<8x128xf32>
    %90 = arith.mulf %89, %15 : vector<8x128xf32>
    %91 = arith.addf %90, %18 : vector<8x128xf32>
    %92 = vector.extract_strided_slice %91 {offsets = [0, 0], sizes = [8, 32], strides = [1, 1]} : vector<8x128xf32> to vector<8x32xf32>
    %93 = vector.extract_strided_slice %91 {offsets = [0, 32], sizes = [8, 32], strides = [1, 1]} : vector<8x128xf32> to vector<8x32xf32>
    %94 = vector.extract_strided_slice %91 {offsets = [0, 64], sizes = [8, 32], strides = [1, 1]} : vector<8x128xf32> to vector<8x32xf32>
    %95 = vector.extract_strided_slice %91 {offsets = [0, 96], sizes = [8, 32], strides = [1, 1]} : vector<8x128xf32> to vector<8x32xf32>
    %96 = arith.mulf %93, %78 : vector<8x32xf32>
    %97 = arith.mulf %92, %94 : vector<8x32xf32>
    %98 = arith.addf %96, %97 : vector<8x32xf32>
    %99 = math.tanh %98 : vector<8x32xf32>
    %100 = arith.mulf %95, %99 : vector<8x32xf32>
    %101 = vector.extract_strided_slice %5 {offsets = [32, 0], sizes = [8, 128], strides = [1, 1]} : vector<64x128xf32> to vector<8x128xf32>
    %102 = arith.truncf %100 : vector<8x32xf32> to vector<8x32xbf16>
    %cst_21 = arith.constant dense<0.000000e+00> : vector<8x128xf32>
    %103 = tpu.matmul %102, %6, %cst_21 {dimension_numbers = #tpu.dot_dimension_numbers<[1], [0], [0], [1], [0, 0, 1, 1], [], []>} : vector<8x32xbf16>, vector<32x128xbf16>, vector<8x128xf32> -> vector<8x128xf32>
    %104 = arith.addf %101, %103 : vector<8x128xf32>
    %105 = arith.negf %104 : vector<8x128xf32>
    %106 = math.exp %105 : vector<8x128xf32>
    %cst_22 = arith.constant 1.000000e+00 : f32
    %107 = vector.broadcast %cst_22 : f32 to vector<8x128xf32>
    %108 = arith.addf %107, %106 : vector<8x128xf32>
    %109 = arith.divf %107, %108 : vector<8x128xf32>
    %110 = arith.mulf %109, %15 : vector<8x128xf32>
    %111 = arith.addf %110, %18 : vector<8x128xf32>
    %112 = vector.extract_strided_slice %111 {offsets = [0, 0], sizes = [8, 32], strides = [1, 1]} : vector<8x128xf32> to vector<8x32xf32>
    %113 = vector.extract_strided_slice %111 {offsets = [0, 32], sizes = [8, 32], strides = [1, 1]} : vector<8x128xf32> to vector<8x32xf32>
    %114 = vector.extract_strided_slice %111 {offsets = [0, 64], sizes = [8, 32], strides = [1, 1]} : vector<8x128xf32> to vector<8x32xf32>
    %115 = vector.extract_strided_slice %111 {offsets = [0, 96], sizes = [8, 32], strides = [1, 1]} : vector<8x128xf32> to vector<8x32xf32>
    %116 = arith.mulf %113, %98 : vector<8x32xf32>
    %117 = arith.mulf %112, %114 : vector<8x32xf32>
    %118 = arith.addf %116, %117 : vector<8x32xf32>
    %119 = math.tanh %118 : vector<8x32xf32>
    %120 = arith.mulf %115, %119 : vector<8x32xf32>
    %121 = vector.extract_strided_slice %5 {offsets = [40, 0], sizes = [8, 128], strides = [1, 1]} : vector<64x128xf32> to vector<8x128xf32>
    %122 = arith.truncf %120 : vector<8x32xf32> to vector<8x32xbf16>
    %cst_23 = arith.constant dense<0.000000e+00> : vector<8x128xf32>
    %123 = tpu.matmul %122, %6, %cst_23 {dimension_numbers = #tpu.dot_dimension_numbers<[1], [0], [0], [1], [0, 0, 1, 1], [], []>} : vector<8x32xbf16>, vector<32x128xbf16>, vector<8x128xf32> -> vector<8x128xf32>
    %124 = arith.addf %121, %123 : vector<8x128xf32>
    %125 = arith.negf %124 : vector<8x128xf32>
    %126 = math.exp %125 : vector<8x128xf32>
    %cst_24 = arith.constant 1.000000e+00 : f32
    %127 = vector.broadcast %cst_24 : f32 to vector<8x128xf32>
    %128 = arith.addf %127, %126 : vector<8x128xf32>
    %129 = arith.divf %127, %128 : vector<8x128xf32>
    %130 = arith.mulf %129, %15 : vector<8x128xf32>
    %131 = arith.addf %130, %18 : vector<8x128xf32>
    %132 = vector.extract_strided_slice %131 {offsets = [0, 0], sizes = [8, 32], strides = [1, 1]} : vector<8x128xf32> to vector<8x32xf32>
    %133 = vector.extract_strided_slice %131 {offsets = [0, 32], sizes = [8, 32], strides = [1, 1]} : vector<8x128xf32> to vector<8x32xf32>
    %134 = vector.extract_strided_slice %131 {offsets = [0, 64], sizes = [8, 32], strides = [1, 1]} : vector<8x128xf32> to vector<8x32xf32>
    %135 = vector.extract_strided_slice %131 {offsets = [0, 96], sizes = [8, 32], strides = [1, 1]} : vector<8x128xf32> to vector<8x32xf32>
    %136 = arith.mulf %133, %118 : vector<8x32xf32>
    %137 = arith.mulf %132, %134 : vector<8x32xf32>
    %138 = arith.addf %136, %137 : vector<8x32xf32>
    %139 = math.tanh %138 : vector<8x32xf32>
    %140 = arith.mulf %135, %139 : vector<8x32xf32>
    %141 = vector.extract_strided_slice %5 {offsets = [48, 0], sizes = [8, 128], strides = [1, 1]} : vector<64x128xf32> to vector<8x128xf32>
    %142 = arith.truncf %140 : vector<8x32xf32> to vector<8x32xbf16>
    %cst_25 = arith.constant dense<0.000000e+00> : vector<8x128xf32>
    %143 = tpu.matmul %142, %6, %cst_25 {dimension_numbers = #tpu.dot_dimension_numbers<[1], [0], [0], [1], [0, 0, 1, 1], [], []>} : vector<8x32xbf16>, vector<32x128xbf16>, vector<8x128xf32> -> vector<8x128xf32>
    %144 = arith.addf %141, %143 : vector<8x128xf32>
    %145 = arith.negf %144 : vector<8x128xf32>
    %146 = math.exp %145 : vector<8x128xf32>
    %cst_26 = arith.constant 1.000000e+00 : f32
    %147 = vector.broadcast %cst_26 : f32 to vector<8x128xf32>
    %148 = arith.addf %147, %146 : vector<8x128xf32>
    %149 = arith.divf %147, %148 : vector<8x128xf32>
    %150 = arith.mulf %149, %15 : vector<8x128xf32>
    %151 = arith.addf %150, %18 : vector<8x128xf32>
    %152 = vector.extract_strided_slice %151 {offsets = [0, 0], sizes = [8, 32], strides = [1, 1]} : vector<8x128xf32> to vector<8x32xf32>
    %153 = vector.extract_strided_slice %151 {offsets = [0, 32], sizes = [8, 32], strides = [1, 1]} : vector<8x128xf32> to vector<8x32xf32>
    %154 = vector.extract_strided_slice %151 {offsets = [0, 64], sizes = [8, 32], strides = [1, 1]} : vector<8x128xf32> to vector<8x32xf32>
    %155 = vector.extract_strided_slice %151 {offsets = [0, 96], sizes = [8, 32], strides = [1, 1]} : vector<8x128xf32> to vector<8x32xf32>
    %156 = arith.mulf %153, %138 : vector<8x32xf32>
    %157 = arith.mulf %152, %154 : vector<8x32xf32>
    %158 = arith.addf %156, %157 : vector<8x32xf32>
    %159 = math.tanh %158 : vector<8x32xf32>
    %160 = arith.mulf %155, %159 : vector<8x32xf32>
    %161 = vector.extract_strided_slice %5 {offsets = [56, 0], sizes = [8, 128], strides = [1, 1]} : vector<64x128xf32> to vector<8x128xf32>
    %162 = arith.truncf %160 : vector<8x32xf32> to vector<8x32xbf16>
    %cst_27 = arith.constant dense<0.000000e+00> : vector<8x128xf32>
    %163 = tpu.matmul %162, %6, %cst_27 {dimension_numbers = #tpu.dot_dimension_numbers<[1], [0], [0], [1], [0, 0, 1, 1], [], []>} : vector<8x32xbf16>, vector<32x128xbf16>, vector<8x128xf32> -> vector<8x128xf32>
    %164 = arith.addf %161, %163 : vector<8x128xf32>
    %165 = arith.negf %164 : vector<8x128xf32>
    %166 = math.exp %165 : vector<8x128xf32>
    %cst_28 = arith.constant 1.000000e+00 : f32
    %167 = vector.broadcast %cst_28 : f32 to vector<8x128xf32>
    %168 = arith.addf %167, %166 : vector<8x128xf32>
    %169 = arith.divf %167, %168 : vector<8x128xf32>
    %170 = arith.mulf %169, %15 : vector<8x128xf32>
    %171 = arith.addf %170, %18 : vector<8x128xf32>
    %172 = vector.extract_strided_slice %171 {offsets = [0, 0], sizes = [8, 32], strides = [1, 1]} : vector<8x128xf32> to vector<8x32xf32>
    %173 = vector.extract_strided_slice %171 {offsets = [0, 32], sizes = [8, 32], strides = [1, 1]} : vector<8x128xf32> to vector<8x32xf32>
    %174 = vector.extract_strided_slice %171 {offsets = [0, 64], sizes = [8, 32], strides = [1, 1]} : vector<8x128xf32> to vector<8x32xf32>
    %175 = vector.extract_strided_slice %171 {offsets = [0, 96], sizes = [8, 32], strides = [1, 1]} : vector<8x128xf32> to vector<8x32xf32>
    %176 = arith.mulf %173, %158 : vector<8x32xf32>
    %177 = arith.mulf %172, %174 : vector<8x32xf32>
    %178 = arith.addf %176, %177 : vector<8x32xf32>
    %179 = math.tanh %178 : vector<8x32xf32>
    %180 = arith.mulf %175, %179 : vector<8x32xf32>
    %c0_29 = arith.constant 0 : index
    %c0_30 = arith.constant 0 : index
    %181 = vector.load %arg4[%c0_29, %c0_30] : memref<32x128xf32, #tpu.memory_space<vmem>>, vector<32x128xf32>
    %cst_31 = arith.constant dense<0.000000e+00> : vector<8x128xf32>
    %182 = tpu.matmul %180, %181, %cst_31 {dimension_numbers = #tpu.dot_dimension_numbers<[1], [0], [0], [1], [0, 0, 1, 1], [], []>} : vector<8x32xf32>, vector<32x128xf32>, vector<8x128xf32> -> vector<8x128xf32>
    %c0_32 = arith.constant 0 : index
    %c0_33 = arith.constant 0 : index
    %183 = vector.load %arg5[%c0_32, %c0_33] : memref<1x128xf32, #tpu.memory_space<vmem>>, vector<1x128xf32>
    %184 = vector.broadcast %183 : vector<1x128xf32> to vector<8x128xf32>
    %185 = arith.addf %182, %184 : vector<8x128xf32>
    %186 = arith.negf %185 : vector<8x128xf32>
    %187 = math.exp %186 : vector<8x128xf32>
    %cst_34 = arith.constant 1.000000e+00 : f32
    %188 = vector.broadcast %cst_34 : f32 to vector<8x128xf32>
    %189 = arith.addf %188, %187 : vector<8x128xf32>
    %190 = arith.divf %188, %189 : vector<8x128xf32>
    %cst_35 = arith.constant 0.000000e+00 : f32
    %191 = vector.broadcast %cst_35 : f32 to vector<8x64xf32>
    %192 = tpu.concatenate %180, %178, %191 in 1 : vector<8x32xf32>, vector<8x32xf32>, vector<8x64xf32> -> vector<8x128xf32>
    %193 = tpu.concatenate %192, %190 in 0 : vector<8x128xf32>, vector<8x128xf32> -> vector<16x128xf32>
    %c0_36 = arith.constant 0 : index
    %c0_37 = arith.constant 0 : index
    %194 = vector.load %arg6[%c0_36, %c0_37] : memref<16x128xf32, #tpu.memory_space<vmem>>, vector<16x128xf32>
    tpu.vector_store %arg6[%c0_36, %c0_37], %193 {strides = array<i32>} : memref<16x128xf32, #tpu.memory_space<vmem>>, vector<16x128xf32>,
    return
  }
}

</mosaic_0001>

<llo_original>
// kernel: classifier_lstm_forward.1
$region0: #{classifier_lstm_forward.1}
  #allocation0 [shape = 'u32[]', space=smem, size = 0x4, offset = 0x4, fixed_abs, tag = 'smem constant byte address 0x4 - core index']
  #allocation1 [shape = 'u32[144,128]{1,0:T(1,128)}', space=vmem, size = 0x12000, scoped, tag = 'internal scratch']
  %s0 = inlined_call_operand.vmem [shape: bf16[64,128], index: 0, kind: input, shape index: {}]
  %s1 = inlined_call_operand.vmem [shape: bf16[128,128], index: 1, kind: input, shape index: {}]
  %s2 = inlined_call_operand.vmem [shape: bf16[32,128], index: 2, kind: input, shape index: {}]
  %s3 = inlined_call_operand.vmem [shape: f32[1,128], index: 3, kind: input, shape index: {}]
  %s4 = inlined_call_operand.vmem [shape: f32[32,128], index: 4, kind: input, shape index: {}]
  %s5 = inlined_call_operand.vmem [shape: f32[1,128], index: 5, kind: input, shape index: {}]
  %s6 = inlined_call_operand.vmem [shape: f32[16,128], index: 6, kind: output, shape index: {}]
  %s7 = sld [smem:[#allocation0]]
  $region34: #{classifier_lstm_forward.1} parent=0
    _
  %s9 = ssub.s32 1, %s7
  %s10 = scalar_select 0, %s9, %s7
  // Predicated region
  $region2: #{classifier_lstm_forward.1} parent=0 // pred_check
    _
  $region3: #{classifier_lstm_forward.1} parent=0 // pred_check_branch
    %12 = sbr.rel (0) target = $region5
  $region4: #{classifier_lstm_forward.1} parent=0 // pred_region
    _
  $region5: #{classifier_lstm_forward.1} parent=0 // pred_fallthru
    _
  // Predicated region
  $region6: #{classifier_lstm_forward.1} parent=0 // pred_check
    _
  $region7: #{classifier_lstm_forward.1} parent=0 // pred_check_branch
    %14 = sbr.rel (0) target = $region9
  $region8: #{classifier_lstm_forward.1} parent=0 // pred_region
    _
  $region9: #{classifier_lstm_forward.1} parent=0 // pred_fallthru
    _
  // Predicated region
  $region10: #{classifier_lstm_forward.1} parent=0 // pred_check
    _
  $region11: #{classifier_lstm_forward.1} parent=0 // pred_check_branch
    %16 = sbr.rel (0) target = $region13
  $region12: #{classifier_lstm_forward.1} parent=0 // pred_region
    _
  $region13: #{classifier_lstm_forward.1} parent=0 // pred_fallthru
    _
  // Predicated region
  $region14: #{classifier_lstm_forward.1} parent=0 // pred_check
    _
  $region15: #{classifier_lstm_forward.1} parent=0 // pred_check_branch
    %18 = sbr.rel (0) target = $region17
  $region16: #{classifier_lstm_forward.1} parent=0 // pred_region
    _
  $region17: #{classifier_lstm_forward.1} parent=0 // pred_fallthru
    _
  // Predicated region
  $region18: #{classifier_lstm_forward.1} parent=0 // pred_check
    _
  $region19: #{classifier_lstm_forward.1} parent=0 // pred_check_branch
    %20 = sbr.rel (0) target = $region21
  $region20: #{classifier_lstm_forward.1} parent=0 // pred_region
    _
  $region21: #{classifier_lstm_forward.1} parent=0 // pred_fallthru
    _
  // Predicated region
  $region22: #{classifier_lstm_forward.1} parent=0 // pred_check
    _
  $region23: #{classifier_lstm_forward.1} parent=0 // pred_check_branch
    %22 = sbr.rel (0) target = $region25
  $region24: #{classifier_lstm_forward.1} parent=0 // pred_region
    _
  $region25: #{classifier_lstm_forward.1} parent=0 // pred_fallthru
    _
  %v24 = vld [vmem:[%s0] sm:$0xf]
  %v25 = vld [vmem:[%s0 + $0x4] sm:$0xf]
  %v26 = vld [vmem:[%s0 + $0x8] sm:$0xf]
  %v27 = vld [vmem:[%s0 + $0xc] sm:$0xf]
  %v28 = vld [vmem:[%s0 + $0x10] sm:$0xf]
  %v29 = vld [vmem:[%s0 + $0x14] sm:$0xf]
  %v30 = vld [vmem:[%s0 + $0x18] sm:$0xf]
  %v31 = vld [vmem:[%s0 + $0x1c] sm:$0xf]
  %v32 = vld [vmem:[%s1] sm:$0xf]
  %v33 = vld [vmem:[%s1 + $0x4] sm:$0xf]
  %v34 = vld [vmem:[%s1 + $0x8] sm:$0xf]
  %v35 = vld [vmem:[%s1 + $0xc] sm:$0xf]
  %v36 = vld [vmem:[%s1 + $0x10] sm:$0xf]
  %v37 = vld [vmem:[%s1 + $0x14] sm:$0xf]
  %v38 = vld [vmem:[%s1 + $0x18] sm:$0xf]
  %v39 = vld [vmem:[%s1 + $0x1c] sm:$0xf]
  %v40 = vld [vmem:[%s1 + $0x20] sm:$0xf]
  %v41 = vld [vmem:[%s1 + $0x24] sm:$0xf]
  %v42 = vld [vmem:[%s1 + $0x28] sm:$0xf]
  %v43 = vld [vmem:[%s1 + $0x2c] sm:$0xf]
  %v44 = vld [vmem:[%s1 + $0x30] sm:$0xf]
  %v45 = vld [vmem:[%s1 + $0x34] sm:$0xf]
  %v46 = vld [vmem:[%s1 + $0x38] sm:$0xf]
  %v47 = vld [vmem:[%s1 + $0x3c] sm:$0xf]
  %v48 = vld [vmem:[%s3] sm:$0x1]
  %v50 = vlaneseq
  %v51 = vshrl.u32 %v50, 7
  %v52 = vsub.s32 0, %v51
  %v53 = vrot.slane %v48, %v52
  %v63 = vunpack.c.l.b16 %v24
  %v64 = vunpack.c.l.b16 %v25
  %v65 = vunpack.c.l.b16 %v26
  %v66 = vunpack.c.l.b16 %v27
  %v67 = vunpack.c.l.b16 %v28
  %v68 = vunpack.c.l.b16 %v29
  %v69 = vunpack.c.l.b16 %v30
  %v70 = vunpack.c.l.b16 %v31
  %v71 = vpack.c.b16 %v64, %v63
  %v72 = vpack.c.b16 %v66, %v65
  %v73 = vpack.c.b16 %v68, %v67
  %v74 = vpack.c.b16 %v70, %v69
  %v95 = vunpack.c.l.b16 %v32
  %v96 = vunpack.c.l.b16 %v33
  %v97 = vunpack.c.l.b16 %v34
  %v98 = vunpack.c.l.b16 %v35
  %v99 = vunpack.c.l.b16 %v36
  %v100 = vunpack.c.l.b16 %v37
  %v101 = vunpack.c.l.b16 %v38
  %v102 = vunpack.c.l.b16 %v39
  %v103 = vunpack.c.l.b16 %v40
  %v104 = vunpack.c.l.b16 %v41
  %v105 = vunpack.c.l.b16 %v42
  %v106 = vunpack.c.l.b16 %v43
  %v107 = vunpack.c.l.b16 %v44
  %v108 = vunpack.c.l.b16 %v45
  %v109 = vunpack.c.l.b16 %v46
  %v110 = vunpack.c.l.b16 %v47
  %v111 = vpack.c.b16 %v96, %v95
  %v112 = vpack.c.b16 %v98, %v97
  %v113 = vpack.c.b16 %v100, %v99
  %v114 = vpack.c.b16 %v102, %v101
  %v115 = vpack.c.b16 %v104, %v103
  %v116 = vpack.c.b16 %v106, %v105
  %v117 = vpack.c.b16 %v108, %v107
  %v118 = vpack.c.b16 %v110, %v109
  %127 = vmatprep.subr.bf16.mxu0 0
  %128 = vmatpush1.bf16.msra.mxu0 %v111
  %129 = vmatprep.subr.bf16.mxu0 0
  %130 = vmatpush1.bf16.msra.mxu0 %v112
  %131 = vmatprep.subr.bf16.mxu0 0
  %132 = vmatpush1.bf16.msra.mxu0 %v113
  %133 = vmatprep.subr.bf16.mxu0 0
  %134 = vmatpush1.bf16.msra.mxu0 %v114
  %135 = vmatprep.subr.bf16.mxu0 0
  %136 = vmatpush1.bf16.msra.mxu0 %v115
  %137 = vmatprep.subr.bf16.mxu0 0
  %138 = vmatpush1.bf16.msra.mxu0 %v116
  %139 = vmatprep.subr.bf16.mxu0 0
  %140 = vmatpush1.bf16.msra.mxu0 %v117
  %141 = vmatprep.subr.bf16.mxu0 0
  %142 = vmatpush1.bf16.msra.mxu0 %v118
  %143 = vmatprep.subr.bf16.mxu0 0
  %144 = vmatpush1.bf16.msra.mxu0 0
  %145 = vmatprep.subr.bf16.mxu0 0
  %146 = vmatpush1.bf16.msra.mxu0 0
  %147 = vmatprep.subr.bf16.mxu0 0
  %148 = vmatpush1.bf16.msra.mxu0 0
  %149 = vmatprep.subr.bf16.mxu0 0
  %150 = vmatpush1.bf16.msra.mxu0 0
  %151 = vmatprep.subr.bf16.mxu0 0
  %152 = vmatpush1.bf16.msra.mxu0 0
  %153 = vmatprep.subr.bf16.mxu0 0
  %154 = vmatpush1.bf16.msra.mxu0 0
  %155 = vmatprep.subr.bf16.mxu0 0
  %156 = vmatpush1.bf16.msra.mxu0 0
  %157 = vmatprep.subr.bf16.mxu0 0
  %158 = vmatpush1.bf16.msra.mxu0 0
  %159 = vmatprep.mubr.bf16.mxu0 0
  %160 = vmatmul.mubr.bf16.gmra.mrb[0].mxu0 %v71
  %v161 = vpop.f32.mrb[0].mxu0
  %v162 = vadd.f32 %v53, %v161
  %v163 = vpop.f32.mrb[0].mxu0
  %v164 = vpop.f32.mrb[0].mxu0
  %v165 = vadd.f32 %v53, %v164
  %v166 = vpop.f32.mrb[0].mxu0
  %167 = vmatprep.mubr.bf16.mxu0 0
  %168 = vmatmul.mubr.bf16.gmra.mrb[0].mxu0 %v72
  %v169 = vpop.f32.mrb[0].mxu0
  %v170 = vadd.f32 %v53, %v169
  %v171 = vpop.f32.mrb[0].mxu0
  %v172 = vpop.f32.mrb[0].mxu0
  %v173 = vadd.f32 %v53, %v172
  %v174 = vpop.f32.mrb[0].mxu0
  %175 = vmatprep.mubr.bf16.mxu0 0
  %176 = vmatmul.mubr.bf16.gmra.mrb[0].mxu0 %v73
  %v177 = vpop.f32.mrb[0].mxu0
  %v178 = vadd.f32 %v53, %v177
  %v179 = vpop.f32.mrb[0].mxu0
  %v180 = vpop.f32.mrb[0].mxu0
  %v181 = vadd.f32 %v53, %v180
  %v182 = vpop.f32.mrb[0].mxu0
  %183 = vmatprep.mubr.bf16.mxu0 0
  %184 = vmatmul.mubr.bf16.gmra.mrb[0].mxu0 %v74
  %v185 = vpop.f32.mrb[0].mxu0
  %v186 = vadd.f32 %v53, %v185
  %v187 = vpop.f32.mrb[0].mxu0
  %v188 = vpop.f32.mrb[0].mxu0
  %v189 = vadd.f32 %v53, %v188
  %v190 = vpop.f32.mrb[0].mxu0
  %191 = vdwg.mxu0
  %v192 = vld [vmem:[%s2] sm:$0xf]
  %v193 = vld [vmem:[%s2 + $0x4] sm:$0xf]
  %v194 = vld [vmem:[%s2 + $0x8] sm:$0xf]
  %v195 = vld [vmem:[%s2 + $0xc] sm:$0xf]
  %v196 = vlaneseq
  %v197 = vand.u32 %v196, 127
  %vm198 = vcmp.ge.s32.totalorder %v197, 64
  %vm199 = vcmp.lt.s32.totalorder %v197, 96
  %vm200 = vmand %vm198, %vm199
  %v201 = vsel %vm200, 2.0, 1.0
  %v202 = vsel %vm200, -1.0, 0.0
  %v207 = vunpack.c.l.b16 %v192
  %v208 = vunpack.c.l.b16 %v193
  %v209 = vunpack.c.l.b16 %v194
  %v210 = vunpack.c.l.b16 %v195
  %v211 = vpack.c.b16 %v208, %v207
  %v212 = vpack.c.b16 %v210, %v209
  %vm215 = vcmask 261120
  %v217 = vsel %vm215, 0, 0
  %219 = vmatprep.subr.bf16.mxu0 0
  %220 = vmatpush1.bf16.msra.mxu0 %v211
  %221 = vmatprep.subr.bf16.mxu0 0
  %222 = vmatpush1.bf16.msra.mxu0 %v212
  %223 = vmatprep.subr.bf16.mxu0 0
  %224 = vmatpush1.bf16.msra.mxu0 0
  %225 = vmatprep.subr.bf16.mxu0 0
  %226 = vmatpush1.bf16.msra.mxu0 0
  %227 = vmatprep.subr.bf16.mxu0 0
  %228 = vmatpush1.bf16.msra.mxu0 0
  %229 = vmatprep.subr.bf16.mxu0 0
  %230 = vmatpush1.bf16.msra.mxu0 0
  %231 = vmatprep.subr.bf16.mxu0 0
  %232 = vmatpush1.bf16.msra.mxu0 0
  %233 = vmatprep.subr.bf16.mxu0 0
  %234 = vmatpush1.bf16.msra.mxu0 0
  %235 = vmatprep.subr.bf16.mxu0 0
  %236 = vmatpush1.bf16.msra.mxu0 0
  %237 = vmatprep.subr.bf16.mxu0 0
  %238 = vmatpush1.bf16.msra.mxu0 0
  %239 = vmatprep.subr.bf16.mxu0 0
  %240 = vmatpush1.bf16.msra.mxu0 0
  %241 = vmatprep.subr.bf16.mxu0 0
  %242 = vmatpush1.bf16.msra.mxu0 0
  %243 = vmatprep.subr.bf16.mxu0 0
  %244 = vmatpush1.bf16.msra.mxu0 0
  %245 = vmatprep.subr.bf16.mxu0 0
  %246 = vmatpush1.bf16.msra.mxu0 0
  %247 = vmatprep.subr.bf16.mxu0 0
  %248 = vmatpush1.bf16.msra.mxu0 0
  %249 = vmatprep.subr.bf16.mxu0 0
  %250 = vmatpush1.bf16.msra.mxu0 0
  %251 = vmatprep.mubr.bf16.mxu0 0
  %252 = vmatmul.mubr.bf16.gmra.mrb[0].mxu0 %v217
  %v253 = vpop.f32.mrb[0].mxu0
  %v254 = vadd.f32 0.0, %v253
  %v255 = vpop.f32.mrb[0].mxu0
  %v256 = vpop.f32.mrb[0].mxu0
  %v257 = vpop.f32.mrb[0].mxu0
  %258 = vdwg.mxu0
  %v259 = vadd.f32 %v162, %v254
  %v260 = vxor.u32 %v259, 2147483648
  %v261 = vmul.f32 %v260, 1.442695
  %v262 = vpow.pop %v261
  %v263 = vadd.f32 %v262, 1.0
  %v264 = vrcp.pop %v263
  %v265 = vmul.f32 1.0, %v264
  %v266 = vmul.f32 %v265, %v201
  %v267 = vadd.f32 %v266, %v202
  %v268 = vmul.f32 %v267, 0.0
  %270 = vrot.lane.b32.xlu0 %v267, 64
  %v271 = vpop.permute.xlu0 %270
  %v273 = vmul.f32 %v267, %v271
  %275 = vrot.lane.b32.xlu0 %v273, 32
  %v276 = vpop.permute.xlu0 %275
  %v278 = vadd.f32 %v268, %v276
  %v279 = vtanh.pop %v278
  %281 = vrot.lane.b32.xlu0 %v279, 64
  %v282 = vpop.permute.xlu0 %281
  %v284 = vmul.f32 %v267, %v282
  %v285 = vpack.c.bf16 %v284, %v284
  %287 = vrot.lane.b32.xlu0 %v285, 32
  %v288 = vpop.permute.xlu0 %287
  %v290 = vsel %vm215, %v288, 0
  %292 = vmatprep.subr.bf16.mxu0 0
  %293 = vmatpush1.bf16.msra.mxu0 %v211
  %294 = vmatprep.subr.bf16.mxu0 0
  %295 = vmatpush1.bf16.msra.mxu0 %v212
  %296 = vmatprep.subr.bf16.mxu0 0
  %297 = vmatpush1.bf16.msra.mxu0 0
  %298 = vmatprep.subr.bf16.mxu0 0
  %299 = vmatpush1.bf16.msra.mxu0 0
  %300 = vmatprep.subr.bf16.mxu0 0
  %301 = vmatpush1.bf16.msra.mxu0 0
  %302 = vmatprep.subr.bf16.mxu0 0
  %303 = vmatpush1.bf16.msra.mxu0 0
  %304 = vmatprep.subr.bf16.mxu0 0
  %305 = vmatpush1.bf16.msra.mxu0 0
  %306 = vmatprep.subr.bf16.mxu0 0
  %307 = vmatpush1.bf16.msra.mxu0 0
  %308 = vmatprep.subr.bf16.mxu0 0
  %309 = vmatpush1.bf16.msra.mxu0 0
  %310 = vmatprep.subr.bf16.mxu0 0
  %311 = vmatpush1.bf16.msra.mxu0 0
  %312 = vmatprep.subr.bf16.mxu0 0
  %313 = vmatpush1.bf16.msra.mxu0 0
  %314 = vmatprep.subr.bf16.mxu0 0
  %315 = vmatpush1.bf16.msra.mxu0 0
  %316 = vmatprep.subr.bf16.mxu0 0
  %317 = vmatpush1.bf16.msra.mxu0 0
  %318 = vmatprep.subr.bf16.mxu0 0
  %319 = vmatpush1.bf16.msra.mxu0 0
  %320 = vmatprep.subr.bf16.mxu0 0
  %321 = vmatpush1.bf16.msra.mxu0 0
  %322 = vmatprep.subr.bf16.mxu0 0
  %323 = vmatpush1.bf16.msra.mxu0 0
  %324 = vmatprep.mubr.bf16.mxu0 0
  %325 = vmatmul.mubr.bf16.gmra.mrb[0].mxu0 %v290
  %v326 = vpop.f32.mrb[0].mxu0
  %v327 = vadd.f32 0.0, %v326
  %v328 = vpop.f32.mrb[0].mxu0
  %v329 = vpop.f32.mrb[0].mxu0
  %v330 = vpop.f32.mrb[0].mxu0
  %331 = vdwg.mxu0
  %v332 = vadd.f32 %v165, %v327
  %v333 = vxor.u32 %v332, 2147483648
  %v334 = vmul.f32 %v333, 1.442695
  %v335 = vpow.pop %v334
  %v336 = vadd.f32 %v335, 1.0
  %v337 = vrcp.pop %v336
  %v338 = vmul.f32 1.0, %v337
  %v339 = vmul.f32 %v338, %v201
  %v340 = vadd.f32 %v339, %v202
  %v341 = vmul.f32 %v340, %v278
  %343 = vrot.lane.b32.xlu0 %v340, 64
  %v344 = vpop.permute.xlu0 %343
  %v346 = vmul.f32 %v340, %v344
  %348 = vrot.lane.b32.xlu0 %v346, 32
  %v349 = vpop.permute.xlu0 %348
  %v351 = vadd.f32 %v341, %v349
  %v352 = vtanh.pop %v351
  %354 = vrot.lane.b32.xlu0 %v352, 64
  %v355 = vpop.permute.xlu0 %354
  %v357 = vmul.f32 %v340, %v355
  %v358 = vpack.c.bf16 %v357, %v357
  %360 = vrot.lane.b32.xlu0 %v358, 32
  %v361 = vpop.permute.xlu0 %360
  %v363 = vsel %vm215, %v361, 0
  %365 = vmatprep.subr.bf16.mxu0 0
  %366 = vmatpush1.bf16.msra.mxu0 %v211
  %367 = vmatprep.subr.bf16.mxu0 0
  %368 = vmatpush1.bf16.msra.mxu0 %v212
  %369 = vmatprep.subr.bf16.mxu0 0
  %370 = vmatpush1.bf16.msra.mxu0 0
  %371 = vmatprep.subr.bf16.mxu0 0
  %372 = vmatpush1.bf16.msra.mxu0 0
  %373 = vmatprep.subr.bf16.mxu0 0
  %374 = vmatpush1.bf16.msra.mxu0 0
  %375 = vmatprep.subr.bf16.mxu0 0
  %376 = vmatpush1.bf16.msra.mxu0 0
  %377 = vmatprep.subr.bf16.mxu0 0
  %378 = vmatpush1.bf16.msra.mxu0 0
  %379 = vmatprep.subr.bf16.mxu0 0
  %380 = vmatpush1.bf16.msra.mxu0 0
  %381 = vmatprep.subr.bf16.mxu0 0
  %382 = vmatpush1.bf16.msra.mxu0 0
  %383 = vmatprep.subr.bf16.mxu0 0
  %384 = vmatpush1.bf16.msra.mxu0 0
  %385 = vmatprep.subr.bf16.mxu0 0
  %386 = vmatpush1.bf16.msra.mxu0 0
  %387 = vmatprep.subr.bf16.mxu0 0
  %388 = vmatpush1.bf16.msra.mxu0 0
  %389 = vmatprep.subr.bf16.mxu0 0
  %390 = vmatpush1.bf16.msra.mxu0 0
  %391 = vmatprep.subr.bf16.mxu0 0
  %392 = vmatpush1.bf16.msra.mxu0 0
  %393 = vmatprep.subr.bf16.mxu0 0
  %394 = vmatpush1.bf16.msra.mxu0 0
  %395 = vmatprep.subr.bf16.mxu0 0
  %396 = vmatpush1.bf16.msra.mxu0 0
  %397 = vmatprep.mubr.bf16.mxu0 0
  %398 = vmatmul.mubr.bf16.gmra.mrb[0].mxu0 %v363
  %v399 = vpop.f32.mrb[0].mxu0
  %v400 = vadd.f32 0.0, %v399
  %v401 = vpop.f32.mrb[0].mxu0
  %v402 = vpop.f32.mrb[0].mxu0
  %v403 = vpop.f32.mrb[0].mxu0
  %404 = vdwg.mxu0
  %v405 = vadd.f32 %v170, %v400
  %v406 = vxor.u32 %v405, 2147483648
  %v407 = vmul.f32 %v406, 1.442695
  %v408 = vpow.pop %v407
  %v409 = vadd.f32 %v408, 1.0
  %v410 = vrcp.pop %v409
  %v411 = vmul.f32 1.0, %v410
  %v412 = vmul.f32 %v411, %v201
  %v413 = vadd.f32 %v412, %v202
  %v414 = vmul.f32 %v413, %v351
  %416 = vrot.lane.b32.xlu0 %v413, 64
  %v417 = vpop.permute.xlu0 %416
  %v419 = vmul.f32 %v413, %v417
  %421 = vrot.lane.b32.xlu0 %v419, 32
  %v422 = vpop.permute.xlu0 %421
  %v424 = vadd.f32 %v414, %v422
  %v425 = vtanh.pop %v424
  %427 = vrot.lane.b32.xlu0 %v425, 64
  %v428 = vpop.permute.xlu0 %427
  %v430 = vmul.f32 %v413, %v428
  %v431 = vpack.c.bf16 %v430, %v430
  %433 = vrot.lane.b32.xlu0 %v431, 32
  %v434 = vpop.permute.xlu0 %433
  %v436 = vsel %vm215, %v434, 0
  %438 = vmatprep.subr.bf16.mxu0 0
  %439 = vmatpush1.bf16.msra.mxu0 %v211
  %440 = vmatprep.subr.bf16.mxu0 0
  %441 = vmatpush1.bf16.msra.mxu0 %v212
  %442 = vmatprep.subr.bf16.mxu0 0
  %443 = vmatpush1.bf16.msra.mxu0 0
  %444 = vmatprep.subr.bf16.mxu0 0
  %445 = vmatpush1.bf16.msra.mxu0 0
  %446 = vmatprep.subr.bf16.mxu0 0
  %447 = vmatpush1.bf16.msra.mxu0 0
  %448 = vmatprep.subr.bf16.mxu0 0
  %449 = vmatpush1.bf16.msra.mxu0 0
  %450 = vmatprep.subr.bf16.mxu0 0
  %451 = vmatpush1.bf16.msra.mxu0 0
  %452 = vmatprep.subr.bf16.mxu0 0
  %453 = vmatpush1.bf16.msra.mxu0 0
  %454 = vmatprep.subr.bf16.mxu0 0
  %455 = vmatpush1.bf16.msra.mxu0 0
  %456 = vmatprep.subr.bf16.mxu0 0
  %457 = vmatpush1.bf16.msra.mxu0 0
  %458 = vmatprep.subr.bf16.mxu0 0
  %459 = vmatpush1.bf16.msra.mxu0 0
  %460 = vmatprep.subr.bf16.mxu0 0
  %461 = vmatpush1.bf16.msra.mxu0 0
  %462 = vmatprep.subr.bf16.mxu0 0
  %463 = vmatpush1.bf16.msra.mxu0 0
  %464 = vmatprep.subr.bf16.mxu0 0
  %465 = vmatpush1.bf16.msra.mxu0 0
  %466 = vmatprep.subr.bf16.mxu0 0
  %467 = vmatpush1.bf16.msra.mxu0 0
  %468 = vmatprep.subr.bf16.mxu0 0
  %469 = vmatpush1.bf16.msra.mxu0 0
  %470 = vmatprep.mubr.bf16.mxu0 0
  %471 = vmatmul.mubr.bf16.gmra.mrb[0].mxu0 %v436
  %v472 = vpop.f32.mrb[0].mxu0
  %v473 = vadd.f32 0.0, %v472
  %v474 = vpop.f32.mrb[0].mxu0
  %v475 = vpop.f32.mrb[0].mxu0
  %v476 = vpop.f32.mrb[0].mxu0
  %477 = vdwg.mxu0
  %v478 = vadd.f32 %v173, %v473
  %v479 = vxor.u32 %v478, 2147483648
  %v480 = vmul.f32 %v479, 1.442695
  %v481 = vpow.pop %v480
  %v482 = vadd.f32 %v481, 1.0
  %v483 = vrcp.pop %v482
  %v484 = vmul.f32 1.0, %v483
  %v485 = vmul.f32 %v484, %v201
  %v486 = vadd.f32 %v485, %v202
  %v487 = vmul.f32 %v486, %v424
  %489 = vrot.lane.b32.xlu0 %v486, 64
  %v490 = vpop.permute.xlu0 %489
  %v492 = vmul.f32 %v486, %v490
  %494 = vrot.lane.b32.xlu0 %v492, 32
  %v495 = vpop.permute.xlu0 %494
  %v497 = vadd.f32 %v487, %v495
  %v498 = vtanh.pop %v497
  %500 = vrot.lane.b32.xlu0 %v498, 64
  %v501 = vpop.permute.xlu0 %500
  %v503 = vmul.f32 %v486, %v501
  %v504 = vpack.c.bf16 %v503, %v503
  %506 = vrot.lane.b32.xlu0 %v504, 32
  %v507 = vpop.permute.xlu0 %506
  %v509 = vsel %vm215, %v507, 0
  %511 = vmatprep.subr.bf16.mxu0 0
  %512 = vmatpush1.bf16.msra.mxu0 %v211
  %513 = vmatprep.subr.bf16.mxu0 0
  %514 = vmatpush1.bf16.msra.mxu0 %v212
  %515 = vmatprep.subr.bf16.mxu0 0
  %516 = vmatpush1.bf16.msra.mxu0 0
  %517 = vmatprep.subr.bf16.mxu0 0
  %518 = vmatpush1.bf16.msra.mxu0 0
  %519 = vmatprep.subr.bf16.mxu0 0
  %520 = vmatpush1.bf16.msra.mxu0 0
  %521 = vmatprep.subr.bf16.mxu0 0
  %522 = vmatpush1.bf16.msra.mxu0 0
  %523 = vmatprep.subr.bf16.mxu0 0
  %524 = vmatpush1.bf16.msra.mxu0 0
  %525 = vmatprep.subr.bf16.mxu0 0
  %526 = vmatpush1.bf16.msra.mxu0 0
  %527 = vmatprep.subr.bf16.mxu0 0
  %528 = vmatpush1.bf16.msra.mxu0 0
  %529 = vmatprep.subr.bf16.mxu0 0
  %530 = vmatpush1.bf16.msra.mxu0 0
  %531 = vmatprep.subr.bf16.mxu0 0
  %532 = vmatpush1.bf16.msra.mxu0 0
  %533 = vmatprep.subr.bf16.mxu0 0
  %534 = vmatpush1.bf16.msra.mxu0 0
  %535 = vmatprep.subr.bf16.mxu0 0
  %536 = vmatpush1.bf16.msra.mxu0 0
  %537 = vmatprep.subr.bf16.mxu0 0
  %538 = vmatpush1.bf16.msra.mxu0 0
  %539 = vmatprep.subr.bf16.mxu0 0
  %540 = vmatpush1.bf16.msra.mxu0 0
  %541 = vmatprep.subr.bf16.mxu0 0
  %542 = vmatpush1.bf16.msra.mxu0 0
  %543 = vmatprep.mubr.bf16.mxu0 0
  %544 = vmatmul.mubr.bf16.gmra.mrb[0].mxu0 %v509
  %v545 = vpop.f32.mrb[0].mxu0
  %v546 = vadd.f32 0.0, %v545
  %v547 = vpop.f32.mrb[0].mxu0
  %v548 = vpop.f32.mrb[0].mxu0
  %v549 = vpop.f32.mrb[0].mxu0
  %550 = vdwg.mxu0
  %v551 = vadd.f32 %v178, %v546
  %v552 = vxor.u32 %v551, 2147483648
  %v553 = vmul.f32 %v552, 1.442695
  %v554 = vpow.pop %v553
  %v555 = vadd.f32 %v554, 1.0
  %v556 = vrcp.pop %v555
  %v557 = vmul.f32 1.0, %v556
  %v558 = vmul.f32 %v557, %v201
  %v559 = vadd.f32 %v558, %v202
  %v560 = vmul.f32 %v559, %v497
  %562 = vrot.lane.b32.xlu0 %v559, 64
  %v563 = vpop.permute.xlu0 %562
  %v565 = vmul.f32 %v559, %v563
  %567 = vrot.lane.b32.xlu0 %v565, 32
  %v568 = vpop.permute.xlu0 %567
  %v570 = vadd.f32 %v560, %v568
  %v571 = vtanh.pop %v570
  %573 = vrot.lane.b32.xlu0 %v571, 64
  %v574 = vpop.permute.xlu0 %573
  %v576 = vmul.f32 %v559, %v574
  %v577 = vpack.c.bf16 %v576, %v576
  %579 = vrot.lane.b32.xlu0 %v577, 32
  %v580 = vpop.permute.xlu0 %579
  %v582 = vsel %vm215, %v580, 0
  %584 = vmatprep.subr.bf16.mxu0 0
  %585 = vmatpush1.bf16.msra.mxu0 %v211
  %586 = vmatprep.subr.bf16.mxu0 0
  %587 = vmatpush1.bf16.msra.mxu0 %v212
  %588 = vmatprep.subr.bf16.mxu0 0
  %589 = vmatpush1.bf16.msra.mxu0 0
  %590 = vmatprep.subr.bf16.mxu0 0
  %591 = vmatpush1.bf16.msra.mxu0 0
  %592 = vmatprep.subr.bf16.mxu0 0
  %593 = vmatpush1.bf16.msra.mxu0 0
  %594 = vmatprep.subr.bf16.mxu0 0
  %595 = vmatpush1.bf16.msra.mxu0 0
  %596 = vmatprep.subr.bf16.mxu0 0
  %597 = vmatpush1.bf16.msra.mxu0 0
  %598 = vmatprep.subr.bf16.mxu0 0
  %599 = vmatpush1.bf16.msra.mxu0 0
  %600 = vmatprep.subr.bf16.mxu0 0
  %601 = vmatpush1.bf16.msra.mxu0 0
  %602 = vmatprep.subr.bf16.mxu0 0
  %603 = vmatpush1.bf16.msra.mxu0 0
  %604 = vmatprep.subr.bf16.mxu0 0
  %605 = vmatpush1.bf16.msra.mxu0 0
  %606 = vmatprep.subr.bf16.mxu0 0
  %607 = vmatpush1.bf16.msra.mxu0 0
  %608 = vmatprep.subr.bf16.mxu0 0
  %609 = vmatpush1.bf16.msra.mxu0 0
  %610 = vmatprep.subr.bf16.mxu0 0
  %611 = vmatpush1.bf16.msra.mxu0 0
  %612 = vmatprep.subr.bf16.mxu0 0
  %613 = vmatpush1.bf16.msra.mxu0 0
  %614 = vmatprep.subr.bf16.mxu0 0
  %615 = vmatpush1.bf16.msra.mxu0 0
  %616 = vmatprep.mubr.bf16.mxu0 0
  %617 = vmatmul.mubr.bf16.gmra.mrb[0].mxu0 %v582
  %v618 = vpop.f32.mrb[0].mxu0
  %v619 = vadd.f32 0.0, %v618
  %v620 = vpop.f32.mrb[0].mxu0
  %v621 = vpop.f32.mrb[0].mxu0
  %v622 = vpop.f32.mrb[0].mxu0
  %623 = vdwg.mxu0
  %v624 = vadd.f32 %v181, %v619
  %v625 = vxor.u32 %v624, 2147483648
  %v626 = vmul.f32 %v625, 1.442695
  %v627 = vpow.pop %v626
  %v628 = vadd.f32 %v627, 1.0
  %v629 = vrcp.pop %v628
  %v630 = vmul.f32 1.0, %v629
  %v631 = vmul.f32 %v630, %v201
  %v632 = vadd.f32 %v631, %v202
  %v633 = vmul.f32 %v632, %v570
  %635 = vrot.lane.b32.xlu0 %v632, 64
  %v636 = vpop.permute.xlu0 %635
  %v638 = vmul.f32 %v632, %v636
  %640 = vrot.lane.b32.xlu0 %v638, 32
  %v641 = vpop.permute.xlu0 %640
  %v643 = vadd.f32 %v633, %v641
  %v644 = vtanh.pop %v643
  %646 = vrot.lane.b32.xlu0 %v644, 64
  %v647 = vpop.permute.xlu0 %646
  %v649 = vmul.f32 %v632, %v647
  %v650 = vpack.c.bf16 %v649, %v649
  %652 = vrot.lane.b32.xlu0 %v650, 32
  %v653 = vpop.permute.xlu0 %652
  %v655 = vsel %vm215, %v653, 0
  %657 = vmatprep.subr.bf16.mxu0 0
  %658 = vmatpush1.bf16.msra.mxu0 %v211
  %659 = vmatprep.subr.bf16.mxu0 0
  %660 = vmatpush1.bf16.msra.mxu0 %v212
  %661 = vmatprep.subr.bf16.mxu0 0
  %662 = vmatpush1.bf16.msra.mxu0 0
  %663 = vmatprep.subr.bf16.mxu0 0
  %664 = vmatpush1.bf16.msra.mxu0 0
  %665 = vmatprep.subr.bf16.mxu0 0
  %666 = vmatpush1.bf16.msra.mxu0 0
  %667 = vmatprep.subr.bf16.mxu0 0
  %668 = vmatpush1.bf16.msra.mxu0 0
  %669 = vmatprep.subr.bf16.mxu0 0
  %670 = vmatpush1.bf16.msra.mxu0 0
  %671 = vmatprep.subr.bf16.mxu0 0
  %672 = vmatpush1.bf16.msra.mxu0 0
  %673 = vmatprep.subr.bf16.mxu0 0
  %674 = vmatpush1.bf16.msra.mxu0 0
  %675 = vmatprep.subr.bf16.mxu0 0
  %676 = vmatpush1.bf16.msra.mxu0 0
  %677 = vmatprep.subr.bf16.mxu0 0
  %678 = vmatpush1.bf16.msra.mxu0 0
  %679 = vmatprep.subr.bf16.mxu0 0
  %680 = vmatpush1.bf16.msra.mxu0 0
  %681 = vmatprep.subr.bf16.mxu0 0
  %682 = vmatpush1.bf16.msra.mxu0 0
  %683 = vmatprep.subr.bf16.mxu0 0
  %684 = vmatpush1.bf16.msra.mxu0 0
  %685 = vmatprep.subr.bf16.mxu0 0
  %686 = vmatpush1.bf16.msra.mxu0 0
  %687 = vmatprep.subr.bf16.mxu0 0
  %688 = vmatpush1.bf16.msra.mxu0 0
  %689 = vmatprep.mubr.bf16.mxu0 0
  %690 = vmatmul.mubr.bf16.gmra.mrb[0].mxu0 %v655
  %v691 = vpop.f32.mrb[0].mxu0
  %v692 = vadd.f32 0.0, %v691
  %v693 = vpop.f32.mrb[0].mxu0
  %v694 = vpop.f32.mrb[0].mxu0
  %v695 = vpop.f32.mrb[0].mxu0
  %696 = vdwg.mxu0
  %v697 = vadd.f32 %v186, %v692
  %v698 = vxor.u32 %v697, 2147483648
  %v699 = vmul.f32 %v698, 1.442695
  %v700 = vpow.pop %v699
  %v701 = vadd.f32 %v700, 1.0
  %v702 = vrcp.pop %v701
  %v703 = vmul.f32 1.0, %v702
  %v704 = vmul.f32 %v703, %v201
  %v705 = vadd.f32 %v704, %v202
  %v706 = vmul.f32 %v705, %v643
  %708 = vrot.lane.b32.xlu0 %v705, 64
  %v709 = vpop.permute.xlu0 %708
  %v711 = vmul.f32 %v705, %v709
  %713 = vrot.lane.b32.xlu0 %v711, 32
  %v714 = vpop.permute.xlu0 %713
  %v716 = vadd.f32 %v706, %v714
  %v717 = vtanh.pop %v716
  %719 = vrot.lane.b32.xlu0 %v717, 64
  %v720 = vpop.permute.xlu0 %719
  %v722 = vmul.f32 %v705, %v720
  %v723 = vpack.c.bf16 %v722, %v722
  %725 = vrot.lane.b32.xlu0 %v723, 32
  %v726 = vpop.permute.xlu0 %725
  %v728 = vsel %vm215, %v726, 0
  %730 = vmatprep.subr.bf16.mxu0 0
  %731 = vmatpush1.bf16.msra.mxu0 %v211
  %732 = vmatprep.subr.bf16.mxu0 0
  %733 = vmatpush1.bf16.msra.mxu0 %v212
  %734 = vmatprep.subr.bf16.mxu0 0
  %735 = vmatpush1.bf16.msra.mxu0 0
  %736 = vmatprep.subr.bf16.mxu0 0
  %737 = vmatpush1.bf16.msra.mxu0 0
  %738 = vmatprep.subr.bf16.mxu0 0
  %739 = vmatpush1.bf16.msra.mxu0 0
  %740 = vmatprep.subr.bf16.mxu0 0
  %741 = vmatpush1.bf16.msra.mxu0 0
  %742 = vmatprep.subr.bf16.mxu0 0
  %743 = vmatpush1.bf16.msra.mxu0 0
  %744 = vmatprep.subr.bf16.mxu0 0
  %745 = vmatpush1.bf16.msra.mxu0 0
  %746 = vmatprep.subr.bf16.mxu0 0
  %747 = vmatpush1.bf16.msra.mxu0 0
  %748 = vmatprep.subr.bf16.mxu0 0
  %749 = vmatpush1.bf16.msra.mxu0 0
  %750 = vmatprep.subr.bf16.mxu0 0
  %751 = vmatpush1.bf16.msra.mxu0 0
  %752 = vmatprep.subr.bf16.mxu0 0
  %753 = vmatpush1.bf16.msra.mxu0 0
  %754 = vmatprep.subr.bf16.mxu0 0
  %755 = vmatpush1.bf16.msra.mxu0 0
  %756 = vmatprep.subr.bf16.mxu0 0
  %757 = vmatpush1.bf16.msra.mxu0 0
  %758 = vmatprep.subr.bf16.mxu0 0
  %759 = vmatpush1.bf16.msra.mxu0 0
  %760 = vmatprep.subr.bf16.mxu0 0
  %761 = vmatpush1.bf16.msra.mxu0 0
  %762 = vmatprep.mubr.bf16.mxu0 0
  %763 = vmatmul.mubr.bf16.gmra.mrb[0].mxu0 %v728
  %v764 = vpop.f32.mrb[0].mxu0
  %v765 = vadd.f32 0.0, %v764
  %v766 = vpop.f32.mrb[0].mxu0
  %v767 = vpop.f32.mrb[0].mxu0
  %v768 = vpop.f32.mrb[0].mxu0
  %769 = vdwg.mxu0
  %v770 = vadd.f32 %v189, %v765
  %v771 = vxor.u32 %v770, 2147483648
  %v772 = vmul.f32 %v771, 1.442695
  %v773 = vpow.pop %v772
  %v774 = vadd.f32 %v773, 1.0
  %v775 = vrcp.pop %v774
  %v776 = vmul.f32 1.0, %v775
  %v777 = vmul.f32 %v776, %v201
  %v778 = vadd.f32 %v777, %v202
  %v779 = vmul.f32 %v778, %v716
  %781 = vrot.lane.b32.xlu0 %v778, 64
  %v782 = vpop.permute.xlu0 %781
  %v784 = vmul.f32 %v778, %v782
  %786 = vrot.lane.b32.xlu0 %v784, 32
  %v787 = vpop.permute.xlu0 %786
  %v789 = vadd.f32 %v779, %v787
  %v790 = vtanh.pop %v789
  %792 = vrot.lane.b32.xlu0 %v790, 64
  %v793 = vpop.permute.xlu0 %792
  %v795 = vmul.f32 %v778, %v793
  %v796 = vld [vmem:[%s4] sm:$0xff]
  %v797 = vld [vmem:[%s4 + $0x8] sm:$0xff]
  %v798 = vld [vmem:[%s4 + $0x10] sm:$0xff]
  %v799 = vld [vmem:[%s4 + $0x18] sm:$0xff]
  %v800 = vld [vmem:[%s5] sm:$0x1]
  %v802 = vlaneseq
  %v803 = vshrl.u32 %v802, 7
  %v804 = vsub.s32 0, %v803
  %v805 = vrot.slane %v800, %v804
  %808 = vrot.lane.b32.xlu0 %v795, 32
  %v809 = vpop.permute.xlu0 %808
  %v810 = vsel %vm215, %v809, 0
  %812 = vmatprep.subr.mxu0 0.0
  %813 = vmatpush1.msra.mxu0 %v796
  %814 = vmatprep.subr.mxu0 0.0
  %815 = vmatpush1.msra.mxu0 %v797
  %816 = vmatprep.subr.mxu0 0.0
  %817 = vmatpush1.msra.mxu0 %v798
  %818 = vmatprep.subr.mxu0 0.0
  %819 = vmatpush1.msra.mxu0 %v799
  %820 = vmatprep.subr.mxu0 0.0
  %821 = vmatpush1.msra.mxu0 0.0
  %822 = vmatprep.subr.mxu0 0.0
  %823 = vmatpush1.msra.mxu0 0.0
  %824 = vmatprep.subr.mxu0 0.0
  %825 = vmatpush1.msra.mxu0 0.0
  %826 = vmatprep.subr.mxu0 0.0
  %827 = vmatpush1.msra.mxu0 0.0
  %828 = vmatprep.subr.mxu0 0.0
  %829 = vmatpush1.msra.mxu0 0.0
  %830 = vmatprep.subr.mxu0 0.0
  %831 = vmatpush1.msra.mxu0 0.0
  %832 = vmatprep.subr.mxu0 0.0
  %833 = vmatpush1.msra.mxu0 0.0
  %834 = vmatprep.subr.mxu0 0.0
  %835 = vmatpush1.msra.mxu0 0.0
  %836 = vmatprep.subr.mxu0 0.0
  %837 = vmatpush1.msra.mxu0 0.0
  %838 = vmatprep.subr.mxu0 0.0
  %839 = vmatpush1.msra.mxu0 0.0
  %840 = vmatprep.subr.mxu0 0.0
  %841 = vmatpush1.msra.mxu0 0.0
  %842 = vmatprep.subr.mxu0 0.0
  %843 = vmatpush1.msra.mxu0 0.0
  %844 = vmatprep.subr.mxu0 0.0
  %845 = vmatpush1.msra.mxu0 0.0
  %846 = vmatprep.subr.mxu0 0.0
  %847 = vmatpush1.msra.mxu0 0.0
  %848 = vmatprep.subr.mxu0 0.0
  %849 = vmatpush1.msra.mxu0 0.0
  %850 = vmatprep.subr.mxu0 0.0
  %851 = vmatpush1.msra.mxu0 0.0
  %852 = vmatprep.subr.mxu0 0.0
  %853 = vmatpush1.msra.mxu0 0.0
  %854 = vmatprep.subr.mxu0 0.0
  %855 = vmatpush1.msra.mxu0 0.0
  %856 = vmatprep.subr.mxu0 0.0
  %857 = vmatpush1.msra.mxu0 0.0
  %858 = vmatprep.subr.mxu0 0.0
  %859 = vmatpush1.msra.mxu0 0.0
  %860 = vmatprep.subr.mxu0 0.0
  %861 = vmatpush1.msra.mxu0 0.0
  %862 = vmatprep.subr.mxu0 0.0
  %863 = vmatpush1.msra.mxu0 0.0
  %864 = vmatprep.subr.mxu0 0.0
  %865 = vmatpush1.msra.mxu0 0.0
  %866 = vmatprep.subr.mxu0 0.0
  %867 = vmatpush1.msra.mxu0 0.0
  %868 = vmatprep.subr.mxu0 0.0
  %869 = vmatpush1.msra.mxu0 0.0
  %870 = vmatprep.subr.mxu0 0.0
  %871 = vmatpush1.msra.mxu0 0.0
  %872 = vmatprep.subr.mxu0 0.0
  %873 = vmatpush1.msra.mxu0 0.0
  %874 = vmatprep.subr.mxu0 0.0
  %875 = vmatpush1.msra.mxu0 0.0
  %876 = vmatprep.mubr.f32.mxu0 0.0
  %877 = vmatmul.mubr.f32.gmra.mrb[0].mxu0 %v810
  %v878 = vpop.f32.mrb[0].mxu0
  %v879 = vadd.f32 %v805, %v878
  %v880 = vpop.f32.mrb[0].mxu0
  %881 = vdwg.mxu0
  %v882 = vxor.u32 %v879, 2147483648
  %v883 = vmul.f32 %v882, 1.442695
  %v884 = vpow.pop %v883
  %v885 = vadd.f32 %v884, 1.0
  %v886 = vrcp.pop %v885
  %v887 = vmul.f32 1.0, %v886
  %v889 = vsel %vm215, %v809, %v789
  %vm890 = vcmask 523264
  %v891 = vsel %vm890, %v889, 0.0
  %892 = vst [vmem:[%s6] sm:$0xff] %v891
  %893 = vst [vmem:[%s6 + $0x8] sm:$0xff] %v887
  // Predicated region
  $region26: #{classifier_lstm_forward.1} parent=0 // pred_check
    _
  $region27: #{classifier_lstm_forward.1} parent=0 // pred_check_branch
    %895 = sbr.rel (0) target = $region29
  $region28: #{classifier_lstm_forward.1} parent=0 // pred_region
    _
  $region29: #{classifier_lstm_forward.1} parent=0 // pred_fallthru
    _
  // Predicated region
  $region30: #{classifier_lstm_forward.1} parent=0 // pred_check
    _
  $region31: #{classifier_lstm_forward.1} parent=0 // pred_check_branch
    %897 = sbr.rel (0) target = $region33
  $region32: #{classifier_lstm_forward.1} parent=0 // pred_region
    _
  $region33: #{classifier_lstm_forward.1} parent=0 // pred_fallthru
    _

</llo_original>
